<compile_context>
chip_gen: v7x
topology: tpu7x:2x2x1
jax: 0.10.0
libtpu: 0.0.40
codegen_flags: <defaults>
</compile_context>

<pallas_src>
import jax
import jax.numpy as jnp
from jax.experimental import pallas as pl
from jax.experimental.pallas import tpu as pltpu


def _round_up(a, m):
    return -(-a // m) * m


def subject_embedding_kernel(idx_ref, table_ref, out_ref):
    # idx_ref:   (block_rows, pack)            int32, 1-indexed subject ids
    # table_ref: (n_subjects, embed_dim)       float32 (full table, resident in VMEM)
    # out_ref:   (block_rows, pack*embed_dim)  float32 (lane-dense output tile)
    n_subjects, embed_dim = table_ref.shape
    block_rows, pack = idx_ref.shape

    idx = idx_ref[...] - 1                       # "x - 1": 1-indexed -> 0-indexed
    pieces = []
    for p in range(pack):                        # unrolled; pack <= 16
        ids_p = idx[:, p:p + 1]                  # (block_rows, 1)
        emb_p = jnp.zeros((block_rows, embed_dim), out_ref.dtype)
        for k in range(n_subjects):              # tiny vocab: VPU compare/select chain
            emb_p = jnp.where(ids_p == k, table_ref[k:k + 1, :], emb_p)
        pieces.append(emb_p)
    # TODO(synk): ids outside 1..n_subjects silently produce a zero embedding here,
    # whereas torch nn.Embedding raises an index error (no clean in-kernel equivalent).
    out_ref[...] = pieces[0] if pack == 1 else jnp.concatenate(pieces, axis=1)


def subject_embedding(x, table, *, block_n=512):
    """Pallas equivalent of SubjectEmbedding.forward: embed(x - 1)."""
    orig_shape = x.shape
    n_subjects, embed_dim = table.shape

    # Pack several tokens per 128-lane output row when embed_dim divides 128.
    pack = 128 // embed_dim if (embed_dim < 128 and 128 % embed_dim == 0) else 1
    lane_w = pack * embed_dim

    idx = x.reshape(-1).astype(jnp.int32)
    n = idx.shape[0]

    # A block covers block_n tokens = block_rows packed output rows; block_rows must
    # be a multiple of 8 (sublane tile). Clamp block_n to the (rounded-up) input size
    # so tiny inputs don't get padded to a huge tile.
    min_block = 8 * pack
    block_n = max(min_block, (block_n // min_block) * min_block)
    n_padded = _round_up(n, min_block)
    block_n = min(block_n, n_padded)
    n_padded = _round_up(n_padded, block_n)

    if n_padded != n:
        # pad with a valid id (1); padded rows are dropped after the call
        idx = jnp.concatenate([idx, jnp.ones((n_padded - n,), jnp.int32)])

    n_rows = n_padded // pack
    block_rows = block_n // pack
    idx2 = idx.reshape(n_rows, pack)

    out = pl.pallas_call(
        subject_embedding_kernel,
        out_shape=jax.ShapeDtypeStruct((n_rows, lane_w), table.dtype),
        grid_spec=pltpu.PrefetchScalarGridSpec(
            num_scalar_prefetch=0,
            grid=(n_rows // block_rows,),
            in_specs=[
                pl.BlockSpec((block_rows, pack), lambda i: (i, 0)),       # token ids
                pl.BlockSpec((n_subjects, embed_dim), lambda i: (0, 0)),  # full table
            ],
            out_specs=pl.BlockSpec((block_rows, lane_w), lambda i: (i, 0)),
        ),
        compiler_params=pltpu.CompilerParams(
            dimension_semantics=("parallel",),   # shards blocks across v7x's 2 TCs
        ),
    )(idx2, table)

    # (n_rows, pack*embed_dim) and (n_padded, embed_dim) share the same flat layout,
    # so this reshape is free; the [:n] slice only triggers when padding was added.
    out = out.reshape(n_padded, embed_dim)[:n]
    return out.reshape(*orig_shape, embed_dim)


if __name__ == "__main__":
    # Module config (synthetic, deterministic init — no checkpoint load)
    n_subjects = 4
    embed_dim = 32
    B, S = 2, 8

    key = jax.random.PRNGKey(0)
    k_table, k_idx = jax.random.split(key)

    # nn.Embedding(n_subjects, embed_dim).weight ~ N(0, 1)
    table = jax.random.normal(k_table, (n_subjects, embed_dim), dtype=jnp.float32)

    # subject ids are 1-indexed in the original module (hence the x - 1)
    x = jax.random.randint(k_idx, (B, S), minval=1, maxval=n_subjects + 1,
                           dtype=jnp.int32)

    out = subject_embedding(x, table)
    out = jax.block_until_ready(out)

    # Reference check against plain JAX gather
    ref = jnp.take(table, x - 1, axis=0)
    assert out.shape == (B, S, embed_dim), out.shape
    assert jnp.allclose(out, ref, atol=1e-6), "mismatch vs reference gather"

    print("KERNEL_OK")
</pallas_src>

<mosaic_0001>
module attributes {stable_mosaic.version = 11 : i64} {
  func.func @subject_embedding_kernel(%arg0: i32, %arg1: memref<8x4xi32, #tpu.memory_space<vmem>>, %arg2: memref<4x32xf32, #tpu.memory_space<vmem>>, %arg3: memref<8x128xf32, #tpu.memory_space<vmem>>) attributes {dimension_semantics = [#tpu.dimension_semantics<parallel>], iteration_bounds = array<i64: 1>, scalar_prefetch = 0 : i64, scratch_operands = 0 : i64, tpu.core_type = #tpu.core_type<tc>, window_params = [{transform_indices = @transform_0, window_bounds = array<i64: 8, 4>}, {pipeline_mode = #tpu.pipeline_mode<synchronous>, transform_indices = @transform_1, window_bounds = array<i64: 4, 32>}, {transform_indices = @transform_2, window_bounds = array<i64: 8, 128>}]} {
    %c0 = arith.constant 0 : index
    %c0_0 = arith.constant 0 : index
    %0 = vector.load %arg1[%c0, %c0_0] : memref<8x4xi32, #tpu.memory_space<vmem>>, vector<8x4xi32>
    %c1_i32 = arith.constant 1 : i32
    %1 = vector.broadcast %c1_i32 : i32 to vector<8x4xi32>
    %2 = arith.subi %0, %1 : vector<8x4xi32>
    %3 = vector.extract_strided_slice %2 {offsets = [0, 0], sizes = [8, 1], strides = [1, 1]} : vector<8x4xi32> to vector<8x1xi32>
    %cst = arith.constant 0.000000e+00 : f32
    %4 = vector.broadcast %cst : f32 to vector<8x32xf32>
    %c0_i32 = arith.constant 0 : i32
    %5 = vector.broadcast %c0_i32 : i32 to vector<8x1xi32>
    %6 = arith.cmpi eq, %3, %5 : vector<8x1xi32>
    %c0_1 = arith.constant 0 : index
    %c0_2 = arith.constant 0 : index
    %7 = vector.load %arg2[%c0_1, %c0_2] : memref<4x32xf32, #tpu.memory_space<vmem>>, vector<1x32xf32>
    %8 = vector.shape_cast %6 : vector<8x1xi1> to vector<8x1xi1>
    %9 = vector.broadcast %8 : vector<8x1xi1> to vector<8x32xi1>
    %10 = vector.shape_cast %7 : vector<1x32xf32> to vector<1x32xf32>
    %11 = vector.broadcast %10 : vector<1x32xf32> to vector<8x32xf32>
    %12 = arith.select %9, %11, %4 : vector<8x32xi1>, vector<8x32xf32>
    %c1_i32_3 = arith.constant 1 : i32
    %13 = vector.broadcast %c1_i32_3 : i32 to vector<8x1xi32>
    %14 = arith.cmpi eq, %3, %13 : vector<8x1xi32>
    %c1 = arith.constant 1 : index
    %c0_4 = arith.constant 0 : index
    %15 = vector.load %arg2[%c1, %c0_4] : memref<4x32xf32, #tpu.memory_space<vmem>>, vector<1x32xf32>
    %16 = vector.shape_cast %14 : vector<8x1xi1> to vector<8x1xi1>
    %17 = vector.broadcast %16 : vector<8x1xi1> to vector<8x32xi1>
    %18 = vector.shape_cast %15 : vector<1x32xf32> to vector<1x32xf32>
    %19 = vector.broadcast %18 : vector<1x32xf32> to vector<8x32xf32>
    %20 = arith.select %17, %19, %12 : vector<8x32xi1>, vector<8x32xf32>
    %c2_i32 = arith.constant 2 : i32
    %21 = vector.broadcast %c2_i32 : i32 to vector<8x1xi32>
    %22 = arith.cmpi eq, %3, %21 : vector<8x1xi32>
    %c2 = arith.constant 2 : index
    %c0_5 = arith.constant 0 : index
    %23 = vector.load %arg2[%c2, %c0_5] : memref<4x32xf32, #tpu.memory_space<vmem>>, vector<1x32xf32>
    %24 = vector.shape_cast %22 : vector<8x1xi1> to vector<8x1xi1>
    %25 = vector.broadcast %24 : vector<8x1xi1> to vector<8x32xi1>
    %26 = vector.shape_cast %23 : vector<1x32xf32> to vector<1x32xf32>
    %27 = vector.broadcast %26 : vector<1x32xf32> to vector<8x32xf32>
    %28 = arith.select %25, %27, %20 : vector<8x32xi1>, vector<8x32xf32>
    %c3_i32 = arith.constant 3 : i32
    %29 = vector.broadcast %c3_i32 : i32 to vector<8x1xi32>
    %30 = arith.cmpi eq, %3, %29 : vector<8x1xi32>
    %c3 = arith.constant 3 : index
    %c0_6 = arith.constant 0 : index
    %31 = vector.load %arg2[%c3, %c0_6] : memref<4x32xf32, #tpu.memory_space<vmem>>, vector<1x32xf32>
    %32 = vector.shape_cast %30 : vector<8x1xi1> to vector<8x1xi1>
    %33 = vector.broadcast %32 : vector<8x1xi1> to vector<8x32xi1>
    %34 = vector.shape_cast %31 : vector<1x32xf32> to vector<1x32xf32>
    %35 = vector.broadcast %34 : vector<1x32xf32> to vector<8x32xf32>
    %36 = arith.select %33, %35, %28 : vector<8x32xi1>, vector<8x32xf32>
    %37 = vector.extract_strided_slice %2 {offsets = [0, 1], sizes = [8, 1], strides = [1, 1]} : vector<8x4xi32> to vector<8x1xi32>
    %cst_7 = arith.constant 0.000000e+00 : f32
    %38 = vector.broadcast %cst_7 : f32 to vector<8x32xf32>
    %c0_i32_8 = arith.constant 0 : i32
    %39 = vector.broadcast %c0_i32_8 : i32 to vector<8x1xi32>
    %40 = arith.cmpi eq, %37, %39 : vector<8x1xi32>
    %c0_9 = arith.constant 0 : index
    %c0_10 = arith.constant 0 : index
    %41 = vector.load %arg2[%c0_9, %c0_10] : memref<4x32xf32, #tpu.memory_space<vmem>>, vector<1x32xf32>
    %42 = vector.shape_cast %40 : vector<8x1xi1> to vector<8x1xi1>
    %43 = vector.broadcast %42 : vector<8x1xi1> to vector<8x32xi1>
    %44 = vector.shape_cast %41 : vector<1x32xf32> to vector<1x32xf32>
    %45 = vector.broadcast %44 : vector<1x32xf32> to vector<8x32xf32>
    %46 = arith.select %43, %45, %38 : vector<8x32xi1>, vector<8x32xf32>
    %c1_i32_11 = arith.constant 1 : i32
    %47 = vector.broadcast %c1_i32_11 : i32 to vector<8x1xi32>
    %48 = arith.cmpi eq, %37, %47 : vector<8x1xi32>
    %c1_12 = arith.constant 1 : index
    %c0_13 = arith.constant 0 : index
    %49 = vector.load %arg2[%c1_12, %c0_13] : memref<4x32xf32, #tpu.memory_space<vmem>>, vector<1x32xf32>
    %50 = vector.shape_cast %48 : vector<8x1xi1> to vector<8x1xi1>
    %51 = vector.broadcast %50 : vector<8x1xi1> to vector<8x32xi1>
    %52 = vector.shape_cast %49 : vector<1x32xf32> to vector<1x32xf32>
    %53 = vector.broadcast %52 : vector<1x32xf32> to vector<8x32xf32>
    %54 = arith.select %51, %53, %46 : vector<8x32xi1>, vector<8x32xf32>
    %c2_i32_14 = arith.constant 2 : i32
    %55 = vector.broadcast %c2_i32_14 : i32 to vector<8x1xi32>
    %56 = arith.cmpi eq, %37, %55 : vector<8x1xi32>
    %c2_15 = arith.constant 2 : index
    %c0_16 = arith.constant 0 : index
    %57 = vector.load %arg2[%c2_15, %c0_16] : memref<4x32xf32, #tpu.memory_space<vmem>>, vector<1x32xf32>
    %58 = vector.shape_cast %56 : vector<8x1xi1> to vector<8x1xi1>
    %59 = vector.broadcast %58 : vector<8x1xi1> to vector<8x32xi1>
    %60 = vector.shape_cast %57 : vector<1x32xf32> to vector<1x32xf32>
    %61 = vector.broadcast %60 : vector<1x32xf32> to vector<8x32xf32>
    %62 = arith.select %59, %61, %54 : vector<8x32xi1>, vector<8x32xf32>
    %c3_i32_17 = arith.constant 3 : i32
    %63 = vector.broadcast %c3_i32_17 : i32 to vector<8x1xi32>
    %64 = arith.cmpi eq, %37, %63 : vector<8x1xi32>
    %c3_18 = arith.constant 3 : index
    %c0_19 = arith.constant 0 : index
    %65 = vector.load %arg2[%c3_18, %c0_19] : memref<4x32xf32, #tpu.memory_space<vmem>>, vector<1x32xf32>
    %66 = vector.shape_cast %64 : vector<8x1xi1> to vector<8x1xi1>
    %67 = vector.broadcast %66 : vector<8x1xi1> to vector<8x32xi1>
    %68 = vector.shape_cast %65 : vector<1x32xf32> to vector<1x32xf32>
    %69 = vector.broadcast %68 : vector<1x32xf32> to vector<8x32xf32>
    %70 = arith.select %67, %69, %62 : vector<8x32xi1>, vector<8x32xf32>
    %71 = vector.extract_strided_slice %2 {offsets = [0, 2], sizes = [8, 1], strides = [1, 1]} : vector<8x4xi32> to vector<8x1xi32>
    %cst_20 = arith.constant 0.000000e+00 : f32
    %72 = vector.broadcast %cst_20 : f32 to vector<8x32xf32>
    %c0_i32_21 = arith.constant 0 : i32
    %73 = vector.broadcast %c0_i32_21 : i32 to vector<8x1xi32>
    %74 = arith.cmpi eq, %71, %73 : vector<8x1xi32>
    %c0_22 = arith.constant 0 : index
    %c0_23 = arith.constant 0 : index
    %75 = vector.load %arg2[%c0_22, %c0_23] : memref<4x32xf32, #tpu.memory_space<vmem>>, vector<1x32xf32>
    %76 = vector.shape_cast %74 : vector<8x1xi1> to vector<8x1xi1>
    %77 = vector.broadcast %76 : vector<8x1xi1> to vector<8x32xi1>
    %78 = vector.shape_cast %75 : vector<1x32xf32> to vector<1x32xf32>
    %79 = vector.broadcast %78 : vector<1x32xf32> to vector<8x32xf32>
    %80 = arith.select %77, %79, %72 : vector<8x32xi1>, vector<8x32xf32>
    %c1_i32_24 = arith.constant 1 : i32
    %81 = vector.broadcast %c1_i32_24 : i32 to vector<8x1xi32>
    %82 = arith.cmpi eq, %71, %81 : vector<8x1xi32>
    %c1_25 = arith.constant 1 : index
    %c0_26 = arith.constant 0 : index
    %83 = vector.load %arg2[%c1_25, %c0_26] : memref<4x32xf32, #tpu.memory_space<vmem>>, vector<1x32xf32>
    %84 = vector.shape_cast %82 : vector<8x1xi1> to vector<8x1xi1>
    %85 = vector.broadcast %84 : vector<8x1xi1> to vector<8x32xi1>
    %86 = vector.shape_cast %83 : vector<1x32xf32> to vector<1x32xf32>
    %87 = vector.broadcast %86 : vector<1x32xf32> to vector<8x32xf32>
    %88 = arith.select %85, %87, %80 : vector<8x32xi1>, vector<8x32xf32>
    %c2_i32_27 = arith.constant 2 : i32
    %89 = vector.broadcast %c2_i32_27 : i32 to vector<8x1xi32>
    %90 = arith.cmpi eq, %71, %89 : vector<8x1xi32>
    %c2_28 = arith.constant 2 : index
    %c0_29 = arith.constant 0 : index
    %91 = vector.load %arg2[%c2_28, %c0_29] : memref<4x32xf32, #tpu.memory_space<vmem>>, vector<1x32xf32>
    %92 = vector.shape_cast %90 : vector<8x1xi1> to vector<8x1xi1>
    %93 = vector.broadcast %92 : vector<8x1xi1> to vector<8x32xi1>
    %94 = vector.shape_cast %91 : vector<1x32xf32> to vector<1x32xf32>
    %95 = vector.broadcast %94 : vector<1x32xf32> to vector<8x32xf32>
    %96 = arith.select %93, %95, %88 : vector<8x32xi1>, vector<8x32xf32>
    %c3_i32_30 = arith.constant 3 : i32
    %97 = vector.broadcast %c3_i32_30 : i32 to vector<8x1xi32>
    %98 = arith.cmpi eq, %71, %97 : vector<8x1xi32>
    %c3_31 = arith.constant 3 : index
    %c0_32 = arith.constant 0 : index
    %99 = vector.load %arg2[%c3_31, %c0_32] : memref<4x32xf32, #tpu.memory_space<vmem>>, vector<1x32xf32>
    %100 = vector.shape_cast %98 : vector<8x1xi1> to vector<8x1xi1>
    %101 = vector.broadcast %100 : vector<8x1xi1> to vector<8x32xi1>
    %102 = vector.shape_cast %99 : vector<1x32xf32> to vector<1x32xf32>
    %103 = vector.broadcast %102 : vector<1x32xf32> to vector<8x32xf32>
    %104 = arith.select %101, %103, %96 : vector<8x32xi1>, vector<8x32xf32>
    %105 = vector.extract_strided_slice %2 {offsets = [0, 3], sizes = [8, 1], strides = [1, 1]} : vector<8x4xi32> to vector<8x1xi32>
    %cst_33 = arith.constant 0.000000e+00 : f32
    %106 = vector.broadcast %cst_33 : f32 to vector<8x32xf32>
    %c0_i32_34 = arith.constant 0 : i32
    %107 = vector.broadcast %c0_i32_34 : i32 to vector<8x1xi32>
    %108 = arith.cmpi eq, %105, %107 : vector<8x1xi32>
    %c0_35 = arith.constant 0 : index
    %c0_36 = arith.constant 0 : index
    %109 = vector.load %arg2[%c0_35, %c0_36] : memref<4x32xf32, #tpu.memory_space<vmem>>, vector<1x32xf32>
    %110 = vector.shape_cast %108 : vector<8x1xi1> to vector<8x1xi1>
    %111 = vector.broadcast %110 : vector<8x1xi1> to vector<8x32xi1>
    %112 = vector.shape_cast %109 : vector<1x32xf32> to vector<1x32xf32>
    %113 = vector.broadcast %112 : vector<1x32xf32> to vector<8x32xf32>
    %114 = arith.select %111, %113, %106 : vector<8x32xi1>, vector<8x32xf32>
    %c1_i32_37 = arith.constant 1 : i32
    %115 = vector.broadcast %c1_i32_37 : i32 to vector<8x1xi32>
    %116 = arith.cmpi eq, %105, %115 : vector<8x1xi32>
    %c1_38 = arith.constant 1 : index
    %c0_39 = arith.constant 0 : index
    %117 = vector.load %arg2[%c1_38, %c0_39] : memref<4x32xf32, #tpu.memory_space<vmem>>, vector<1x32xf32>
    %118 = vector.shape_cast %116 : vector<8x1xi1> to vector<8x1xi1>
    %119 = vector.broadcast %118 : vector<8x1xi1> to vector<8x32xi1>
    %120 = vector.shape_cast %117 : vector<1x32xf32> to vector<1x32xf32>
    %121 = vector.broadcast %120 : vector<1x32xf32> to vector<8x32xf32>
    %122 = arith.select %119, %121, %114 : vector<8x32xi1>, vector<8x32xf32>
    %c2_i32_40 = arith.constant 2 : i32
    %123 = vector.broadcast %c2_i32_40 : i32 to vector<8x1xi32>
    %124 = arith.cmpi eq, %105, %123 : vector<8x1xi32>
    %c2_41 = arith.constant 2 : index
    %c0_42 = arith.constant 0 : index
    %125 = vector.load %arg2[%c2_41, %c0_42] : memref<4x32xf32, #tpu.memory_space<vmem>>, vector<1x32xf32>
    %126 = vector.shape_cast %124 : vector<8x1xi1> to vector<8x1xi1>
    %127 = vector.broadcast %126 : vector<8x1xi1> to vector<8x32xi1>
    %128 = vector.shape_cast %125 : vector<1x32xf32> to vector<1x32xf32>
    %129 = vector.broadcast %128 : vector<1x32xf32> to vector<8x32xf32>
    %130 = arith.select %127, %129, %122 : vector<8x32xi1>, vector<8x32xf32>
    %c3_i32_43 = arith.constant 3 : i32
    %131 = vector.broadcast %c3_i32_43 : i32 to vector<8x1xi32>
    %132 = arith.cmpi eq, %105, %131 : vector<8x1xi32>
    %c3_44 = arith.constant 3 : index
    %c0_45 = arith.constant 0 : index
    %133 = vector.load %arg2[%c3_44, %c0_45] : memref<4x32xf32, #tpu.memory_space<vmem>>, vector<1x32xf32>
    %134 = vector.shape_cast %132 : vector<8x1xi1> to vector<8x1xi1>
    %135 = vector.broadcast %134 : vector<8x1xi1> to vector<8x32xi1>
    %136 = vector.shape_cast %133 : vector<1x32xf32> to vector<1x32xf32>
    %137 = vector.broadcast %136 : vector<1x32xf32> to vector<8x32xf32>
    %138 = arith.select %135, %137, %130 : vector<8x32xi1>, vector<8x32xf32>
    %139 = tpu.concatenate %36, %70, %104, %138 in 1 : vector<8x32xf32>, vector<8x32xf32>, vector<8x32xf32>, vector<8x32xf32> -> vector<8x128xf32>
    %c0_46 = arith.constant 0 : index
    %c0_47 = arith.constant 0 : index
    %140 = vector.load %arg3[%c0_46, %c0_47] : memref<8x128xf32, #tpu.memory_space<vmem>>, vector<8x128xf32>
    tpu.vector_store %arg3[%c0_46, %c0_47], %139 {strides = array<i32>} : memref<8x128xf32, #tpu.memory_space<vmem>>, vector<8x128xf32>,
    return
  }
  func.func @transform_0(%arg0: i32) -> (i32, i32) {
    %c0_i32 = arith.constant 0 : i32
    %c0_i32_0 = arith.constant 0 : i32
    return %arg0, %c0_i32 : i32, i32
  }
  func.func @transform_1(%arg0: i32) -> (i32, i32) {
    %c0_i32 = arith.constant 0 : i32
    %c0_i32_0 = arith.constant 0 : i32
    %c0_i32_1 = arith.constant 0 : i32
    return %c0_i32, %c0_i32_0 : i32, i32
  }
  func.func @transform_2(%arg0: i32) -> (i32, i32) {
    %c0_i32 = arith.constant 0 : i32
    %c0_i32_0 = arith.constant 0 : i32
    return %arg0, %c0_i32 : i32, i32
  }
}

</mosaic_0001>

<llo_original>
// kernel: tpu_custom_call.1
$region0: #{tpu_custom_call.1}
  #allocation0 [shape = 'u32[]', space=smem, size = 0x4, offset = 0x4, fixed_abs, tag = 'smem constant byte address 0x4 - core index']
  #allocation1 [shape = 'u32[144,128]{1,0:T(1,128)}', space=vmem, size = 0x12000, scoped, tag = 'internal scratch']
  %s0 = inlined_call_operand.vmem [shape: s32[8,4], index: 0, kind: input, shape index: {}]
  %s1 = inlined_call_operand.vmem [shape: f32[4,32], index: 1, kind: input, shape index: {}]
  %s2 = inlined_call_operand.hbm [shape: f32[8,128], index: 2, kind: output, shape index: {}]
  %s3 = sld [smem:[#allocation0]]
  $region18: #{tpu_custom_call.1} parent=0
    _
  %s5 = ssub.s32 1, %s3
  %s6 = scalar_select 0, %s5, %s3
  $region1: #{tpu_custom_call.1} parent=0
    #allocation2 [shape = 'u8[4096]{0}', space=vmem, size = 0x1000, scoped, tag = 'output window, operand 0, single buffered']
    #allocation3 [shape = 's32[1]{0}', space=sflag, size = 0x4, scoped, tag = 'scoped memory for tpu_custom_call.1']
    %7 = vsyncpa [#allocation3], 0
    // Predicated region
    $region2: #{tpu_custom_call.1} parent=1 // pred_check
      _
    $region3: #{tpu_custom_call.1} parent=1 // pred_check_branch
      %9 = sbr.rel (0) target = $region5
    $region4: #{tpu_custom_call.1} parent=1 // pred_region
      _
    $region5: #{tpu_custom_call.1} parent=1 // pred_fallthru
      _
    // Predicated region
    $region6: #{tpu_custom_call.1} parent=1 // pred_check
      _
    $region7: #{tpu_custom_call.1} parent=1 // pred_check_branch
      %11 = sbr.rel (0) target = $region9
    $region8: #{tpu_custom_call.1} parent=1 // pred_region
      _
    $region9: #{tpu_custom_call.1} parent=1 // pred_fallthru
      _
    %v12 = vld [vmem:[%s0] sm:$0xff]
    %v13 = vsub.s32 %v12, 1
    %vm14 = vcmp.eq.s32.totalorder %v13, 0
    %v15 = vld [vmem:[%s1] sm:$0x1]
    %v16 = vsel %vm14, 1, 0
    %17 = vset.pattern.permute.xlu0 0
    %18 = vperm.xlu0 %17, %v16
    %v19 = vpop.permute.xlu0 %18
    %vm20 = vcmp.eq.s32.totalorder %v19, 1
    %v21 = vlaneseq
    %v22 = vshrl.u32 %v21, 7
    %v23 = vsub.s32 0, %v22
    %v24 = vrot.slane %v15, %v23
    %v25 = vsel %vm20, %v24, 0.0
    %vm26 = vcmp.eq.s32.totalorder %v13, 1
    %v27 = vld [vmem:[%s1 + $0x1] sm:$0x1]
    %v28 = vsel %vm26, 1, 0
    %29 = vset.pattern.permute.xlu0 0
    %30 = vperm.xlu0 %29, %v28
    %v31 = vpop.permute.xlu0 %30
    %vm32 = vcmp.eq.s32.totalorder %v31, 1
    %v33 = vlaneseq
    %v34 = vshrl.u32 %v33, 7
    %v35 = vsub.s32 0, %v34
    %v36 = vrot.slane %v27, %v35
    %v37 = vsel %vm32, %v36, %v25
    %vm38 = vcmp.eq.s32.totalorder %v13, 2
    %v39 = vld [vmem:[%s1 + $0x2] sm:$0x1]
    %v40 = vsel %vm38, 1, 0
    %41 = vset.pattern.permute.xlu0 0
    %42 = vperm.xlu0 %41, %v40
    %v43 = vpop.permute.xlu0 %42
    %vm44 = vcmp.eq.s32.totalorder %v43, 1
    %v45 = vlaneseq
    %v46 = vshrl.u32 %v45, 7
    %v47 = vsub.s32 0, %v46
    %v48 = vrot.slane %v39, %v47
    %v49 = vsel %vm44, %v48, %v37
    %vm50 = vcmp.eq.s32.totalorder %v13, 3
    %v51 = vld [vmem:[%s1 + $0x3] sm:$0x1]
    %v52 = vsel %vm50, 1, 0
    %53 = vset.pattern.permute.xlu0 0
    %54 = vperm.xlu0 %53, %v52
    %v55 = vpop.permute.xlu0 %54
    %vm56 = vcmp.eq.s32.totalorder %v55, 1
    %v57 = vlaneseq
    %v58 = vshrl.u32 %v57, 7
    %v59 = vsub.s32 0, %v58
    %v60 = vrot.slane %v51, %v59
    %v61 = vsel %vm56, %v60, %v49
    %62 = vset.pattern.permute.xlu0 1
    %63 = vperm.xlu0 %62, %v16
    %v64 = vpop.permute.xlu0 %63
    %vm65 = vcmp.eq.s32.totalorder %v64, 1
    %v66 = vsel %vm65, %v24, 0.0
    %67 = vset.pattern.permute.xlu0 1
    %68 = vperm.xlu0 %67, %v28
    %v69 = vpop.permute.xlu0 %68
    %vm70 = vcmp.eq.s32.totalorder %v69, 1
    %v71 = vsel %vm70, %v36, %v66
    %72 = vset.pattern.permute.xlu0 1
    %73 = vperm.xlu0 %72, %v40
    %v74 = vpop.permute.xlu0 %73
    %vm75 = vcmp.eq.s32.totalorder %v74, 1
    %v76 = vsel %vm75, %v48, %v71
    %77 = vset.pattern.permute.xlu0 1
    %78 = vperm.xlu0 %77, %v52
    %v79 = vpop.permute.xlu0 %78
    %vm80 = vcmp.eq.s32.totalorder %v79, 1
    %v81 = vsel %vm80, %v60, %v76
    %82 = vset.pattern.permute.xlu0 2
    %83 = vperm.xlu0 %82, %v16
    %v84 = vpop.permute.xlu0 %83
    %vm85 = vcmp.eq.s32.totalorder %v84, 1
    %v86 = vsel %vm85, %v24, 0.0
    %87 = vset.pattern.permute.xlu0 2
    %88 = vperm.xlu0 %87, %v28
    %v89 = vpop.permute.xlu0 %88
    %vm90 = vcmp.eq.s32.totalorder %v89, 1
    %v91 = vsel %vm90, %v36, %v86
    %92 = vset.pattern.permute.xlu0 2
    %93 = vperm.xlu0 %92, %v40
    %v94 = vpop.permute.xlu0 %93
    %vm95 = vcmp.eq.s32.totalorder %v94, 1
    %v96 = vsel %vm95, %v48, %v91
    %97 = vset.pattern.permute.xlu0 2
    %98 = vperm.xlu0 %97, %v52
    %v99 = vpop.permute.xlu0 %98
    %vm100 = vcmp.eq.s32.totalorder %v99, 1
    %v101 = vsel %vm100, %v60, %v96
    %102 = vset.pattern.permute.xlu0 3
    %103 = vperm.xlu0 %102, %v16
    %v104 = vpop.permute.xlu0 %103
    %vm105 = vcmp.eq.s32.totalorder %v104, 1
    %v106 = vsel %vm105, %v24, 0.0
    %107 = vset.pattern.permute.xlu0 3
    %108 = vperm.xlu0 %107, %v28
    %v109 = vpop.permute.xlu0 %108
    %vm110 = vcmp.eq.s32.totalorder %v109, 1
    %v111 = vsel %vm110, %v36, %v106
    %112 = vset.pattern.permute.xlu0 3
    %113 = vperm.xlu0 %112, %v40
    %v114 = vpop.permute.xlu0 %113
    %vm115 = vcmp.eq.s32.totalorder %v114, 1
    %v116 = vsel %vm115, %v48, %v111
    %117 = vset.pattern.permute.xlu0 3
    %118 = vperm.xlu0 %117, %v52
    %v119 = vpop.permute.xlu0 %118
    %vm120 = vcmp.eq.s32.totalorder %v119, 1
    %v121 = vsel %vm120, %v60, %v116
    %123 = vrot.lane.b32.xlu0 %v81, 32
    %v124 = vpop.permute.xlu0 %123
    %127 = vrot.lane.b32.xlu0 %v101, 64
    %v128 = vpop.permute.xlu0 %127
    %131 = vrot.lane.b32.xlu0 %v121, 96
    %v132 = vpop.permute.xlu0 %131
    %vm134 = vcmask 261120
    %v135 = vsel %vm134, %v61, %v124
    %vm136 = vcmask 523264
    %v137 = vsel %vm136, %v135, %v128
    %vm138 = vcmask 785408
    %v139 = vsel %vm138, %v137, %v132
    %140 = vst [vmem:[#allocation2] sm:$0xff] %v139
    // Predicated region
    $region10: #{tpu_custom_call.1} parent=1 // pred_check
      _
    $region11: #{tpu_custom_call.1} parent=1 // pred_check_branch
      %142 = sbr.rel (0) target = $region13
    $region12: #{tpu_custom_call.1} parent=1 // pred_region
      %s144 = ssub.s32 128, 128
      %145 = vsyncadd [#allocation3], %s144
      %s147 = sshll.u32 [#allocation2], 4
      %s148 = int_to_ptr.vmem [resolvable:$true] %s147
      %150 = dma.vmem_to_hbm [thread:$0]  %s148, 128, %s2, [#allocation3]
    $region13: #{tpu_custom_call.1} parent=1 // pred_fallthru
      _
    // Predicated region
    $region14: #{tpu_custom_call.1} parent=1 // pred_check
      _
    $region15: #{tpu_custom_call.1} parent=1 // pred_check_branch
      %152 = sbr.rel (0) target = $region17
    $region16: #{tpu_custom_call.1} parent=1 // pred_region
      %153 = dma.done [#allocation3], 128
    $region17: #{tpu_custom_call.1} parent=1 // pred_fallthru
      _
    %154 = vsyncpa [#allocation3], 1

</llo_original>
